<compile_context>
chip_gen: v6e
topology: v6e:2x2x1
jax: 0.10.0
libtpu: 0.0.40
codegen_flags: <defaults>
</compile_context>

<pallas_src>
import functools

import jax
import jax.numpy as jnp
from jax.experimental import pallas as pl
from jax.experimental.pallas import tpu as pltpu

LANES = 128
MAX_ROW_TILE = 4096  # 4096 x 128 f32 = 2 MiB per input buffer (8 MiB double-buffered)


def _abs_diff_kernel(yt_ref, yp_ref, o_ref, *, row_tile, blocks_per_split,
                     rows_total, needs_mask):
    """Accumulate per-tile sum(|yt - yp|) into a resident (8, 128) output block."""
    c = pl.program_id(0)  # core / split index ("parallel")
    i = pl.program_id(1)  # streaming index    ("arbitrary", reduction)

    @pl.when(i == 0)
    def _():
        o_ref[...] = jnp.zeros_like(o_ref)

    diff = jnp.abs(yt_ref[...].astype(jnp.float32) -
                   yp_ref[...].astype(jnp.float32))

    if needs_mask:
        # Zero rows of the (partial) last block that lie past the end of the array.
        first_row = (c * blocks_per_split + i) * row_tile
        row_ids = first_row + jax.lax.broadcasted_iota(
            jnp.int32, (row_tile, LANES), 0)
        diff = jnp.where(row_ids < rows_total, diff, 0.0)

    # Pure-VPU partial reduce: fold the row tile onto one vreg-shaped (8,128) slab.
    o_ref[...] += jnp.sum(diff.reshape(row_tile // 8, 8, LANES), axis=0)


def regression_metric(y_true, y_pred, min_val, max_val):
    assert y_true.shape == y_pred.shape
    scale = abs(float(max_val) - float(min_val))

    yt_flat = y_true.reshape(-1)
    yp_flat = y_pred.reshape(-1)
    n = yt_flat.shape[0]

    rows_total = n // LANES
    n_main = rows_total * LANES

    # <128-element tail (and the degenerate n < 128 case) handled in plain JAX.
    if n_main == n:
        tail_sum = jnp.float32(0.0)
        yt_main, yp_main = yt_flat, yp_flat
    else:
        tail_sum = jnp.sum(jnp.abs(yt_flat[n_main:].astype(jnp.float32) -
                                   yp_flat[n_main:].astype(jnp.float32)))
        yt_main, yp_main = yt_flat[:n_main], yp_flat[:n_main]

    if rows_total == 0:
        return tail_sum * scale

    # Free 2-D view: no pad / no copy in the aligned (common) case.
    yt2 = yt_main.reshape(rows_total, LANES)
    yp2 = yp_main.reshape(rows_total, LANES)

    # Largest sublane-aligned (multiple-of-8) row tile within the VMEM budget;
    # small inputs collapse to a single block.
    row_tile = min(MAX_ROW_TILE, ((rows_total + 7) // 8) * 8)
    num_blocks = (rows_total + row_tile - 1) // row_tile
    needs_mask = (rows_total % row_tile) != 0

    # Split the stream across 2 TensorCores (v7x megacore) when blocks divide evenly;
    # on 1-TC chips the "parallel" axis is just a serial loop.
    num_splits = 2 if (num_blocks >= 2 and num_blocks % 2 == 0) else 1
    blocks_per_split = num_blocks // num_splits

    kernel = functools.partial(
        _abs_diff_kernel,
        row_tile=row_tile,
        blocks_per_split=blocks_per_split,
        rows_total=rows_total,
        needs_mask=needs_mask,
    )

    partials = pl.pallas_call(
        kernel,
        out_shape=jax.ShapeDtypeStruct((num_splits * 8, LANES), jnp.float32),
        grid_spec=pltpu.PrefetchScalarGridSpec(
            num_scalar_prefetch=0,
            grid=(num_splits, blocks_per_split),
            in_specs=[
                pl.BlockSpec((row_tile, LANES),
                             lambda c, i: (c * blocks_per_split + i, 0)),
                pl.BlockSpec((row_tile, LANES),
                             lambda c, i: (c * blocks_per_split + i, 0)),
            ],
            out_specs=pl.BlockSpec((8, LANES), lambda c, i: (c, 0)),
        ),
        compiler_params=pltpu.CompilerParams(
            dimension_semantics=("parallel", "arbitrary"),
            vmem_limit_bytes=32 * 1024 * 1024,
        ),
        cost_estimate=pl.CostEstimate(
            flops=2 * n_main,
            transcendentals=0,
            bytes_accessed=2 * n_main * 4 + num_splits * 8 * LANES * 4,
        ),
    )(yt2, yp2)

    # Single final cross-lane reduce + scale factor (shift cancels exactly).
    return (jnp.sum(partials) + tail_sum) * scale


if __name__ == "__main__":
    key = jax.random.PRNGKey(0)
    k1, k2 = jax.random.split(key)

    # Small NCHW-like regression-target shape.
    shape = (2, 4, 16, 16)
    y_true = jax.random.uniform(k1, shape, dtype=jnp.float32)
    y_pred = jax.random.uniform(k2, shape, dtype=jnp.float32)

    min_val, max_val = 0.5, 3.5  # deterministic module "params"

    result = regression_metric(y_true, y_pred, min_val, max_val)
    jax.block_until_ready(result)

    # Reference in plain JAX (matches the PyTorch module exactly).
    s = max_val - min_val
    ref = jnp.sum(jnp.abs((y_true * s + min_val) - (y_pred * s + min_val)))
    assert jnp.allclose(result, ref, rtol=1e-5, atol=1e-5), (result, ref)

    print("KERNEL_OK")
</pallas_src>

<mosaic_0001>
module attributes {stable_mosaic.version = 11 : i64} {
  func.func @_abs_diff_kernel(%arg0: i32, %arg1: i32, %arg2: memref<16x128xf32, #tpu.memory_space<vmem>>, %arg3: memref<16x128xf32, #tpu.memory_space<vmem>>, %arg4: memref<8x128xf32, #tpu.memory_space<vmem>>) attributes {dimension_semantics = [#tpu.dimension_semantics<parallel>, #tpu.dimension_semantics<arbitrary>], iteration_bounds = array<i64: 1, 1>, scalar_prefetch = 0 : i64, scratch_operands = 0 : i64, tpu.core_type = #tpu.core_type<tc>, window_params = [{transform_indices = @transform_0, window_bounds = array<i64: 16, 128>}, {transform_indices = @transform_1, window_bounds = array<i64: 16, 128>}, {transform_indices = @transform_2, window_bounds = array<i64: 8, 128>}]} {
    %c0_i32 = arith.constant 0 : i32
    %0 = arith.cmpi eq, %arg1, %c0_i32 : i32
    %1 = arith.extui %0 : i1 to i32
    %c0_i32_0 = arith.constant 0 : i32
    %2 = arith.cmpi ne, %1, %c0_i32_0 : i32
    scf.if %2 {
      %cst_8 = arith.constant 0.000000e+00 : f32
      %12 = vector.broadcast %cst_8 : f32 to vector<8x128xf32>
      %c0_9 = arith.constant 0 : index
      %c0_10 = arith.constant 0 : index
      %13 = vector.load %arg4[%c0_9, %c0_10] : memref<8x128xf32, #tpu.memory_space<vmem>>, vector<8x128xf32>
      tpu.vector_store %arg4[%c0_9, %c0_10], %12 {strides = array<i32>} : memref<8x128xf32, #tpu.memory_space<vmem>>, vector<8x128xf32>,
    } else {
    }
    %c0 = arith.constant 0 : index
    %c0_1 = arith.constant 0 : index
    %3 = vector.load %arg2[%c0, %c0_1] : memref<16x128xf32, #tpu.memory_space<vmem>>, vector<16x128xf32>
    %c0_2 = arith.constant 0 : index
    %c0_3 = arith.constant 0 : index
    %4 = vector.load %arg3[%c0_2, %c0_3] : memref<16x128xf32, #tpu.memory_space<vmem>>, vector<16x128xf32>
    %5 = arith.subf %3, %4 : vector<16x128xf32>
    %6 = math.absf %5 : vector<16x128xf32>
    %c0_4 = arith.constant 0 : index
    %c0_5 = arith.constant 0 : index
    %7 = vector.load %arg4[%c0_4, %c0_5] : memref<8x128xf32, #tpu.memory_space<vmem>>, vector<8x128xf32>
    %8 = vector.shape_cast %6 : vector<16x128xf32> to vector<2x8x128xf32>
    %cst = arith.constant dense<0.000000e+00> : vector<8x128xf32>
    %9 = vector.multi_reduction <add>, %8, %cst [0] : vector<2x8x128xf32> to vector<8x128xf32>
    %10 = arith.addf %7, %9 : vector<8x128xf32>
    %c0_6 = arith.constant 0 : index
    %c0_7 = arith.constant 0 : index
    %11 = vector.load %arg4[%c0_6, %c0_7] : memref<8x128xf32, #tpu.memory_space<vmem>>, vector<8x128xf32>
    tpu.vector_store %arg4[%c0_6, %c0_7], %10 {strides = array<i32>} : memref<8x128xf32, #tpu.memory_space<vmem>>, vector<8x128xf32>,
    return
  }
  func.func @transform_0(%arg0: i32, %arg1: i32) -> (i32, i32) {
    %c1_i32 = arith.constant 1 : i32
    %0 = arith.muli %arg0, %c1_i32 : i32
    %1 = arith.addi %0, %arg1 : i32
    %c0_i32 = arith.constant 0 : i32
    %c0_i32_0 = arith.constant 0 : i32
    return %1, %c0_i32 : i32, i32
  }
  func.func @transform_1(%arg0: i32, %arg1: i32) -> (i32, i32) {
    %c1_i32 = arith.constant 1 : i32
    %0 = arith.muli %arg0, %c1_i32 : i32
    %1 = arith.addi %0, %arg1 : i32
    %c0_i32 = arith.constant 0 : i32
    %c0_i32_0 = arith.constant 0 : i32
    return %1, %c0_i32 : i32, i32
  }
  func.func @transform_2(%arg0: i32, %arg1: i32) -> (i32, i32) {
    %c0_i32 = arith.constant 0 : i32
    %c0_i32_0 = arith.constant 0 : i32
    return %arg0, %c0_i32 : i32, i32
  }
}

</mosaic_0001>

<llo_original>
// kernel: tpu_custom_call.1
$region0: #{tpu_custom_call.1}
  #allocation0 [shape = 'u32[]', space=smem, size = 0x4, offset = 0x4, fixed_abs, tag = 'smem constant byte address 0x4 - core index']
  #allocation1 [shape = 'u32[144,128]{1,0:T(1,128)}', space=vmem, size = 0x12000, scoped, tag = 'internal scratch']
  %s0 = inlined_call_operand.hbm [shape: f32[16,128], index: 0, kind: input, shape index: {}]
  %s1 = inlined_call_operand.hbm [shape: f32[16,128], index: 1, kind: input, shape index: {}]
  %s2 = inlined_call_operand.hbm [shape: f32[8,128], index: 2, kind: output, shape index: {}]
  %s3 = sld [smem:[#allocation0]]
  $region30: #{tpu_custom_call.1} parent=0
    _
  %s5 = ssub.s32 1, %s3
  %s6 = scalar_select 0, %s5, %s3
  $region1: #{tpu_custom_call.1} parent=0
    #allocation2 [shape = 'u8[8192]{0}', space=vmem, size = 0x2000, scoped, tag = 'input window, operand 0, single buffered']
    #allocation3 [shape = 's32[1]{0}', space=sflag, size = 0x4, scoped, tag = 'scoped memory for tpu_custom_call.1']
    #allocation4 [shape = 's32[1]{0}', space=sflag, size = 0x4, scoped, tag = 'scoped memory for tpu_custom_call.1']
    #allocation5 [shape = 'u8[8192]{0}', space=vmem, size = 0x2000, scoped, tag = 'input window, operand 1, single buffered']
    #allocation6 [shape = 's32[1]{0}', space=sflag, size = 0x4, scoped, tag = 'scoped memory for tpu_custom_call.1']
    #allocation7 [shape = 'u8[4096]{0}', space=vmem, size = 0x1000, scoped, tag = 'output window, operand 0, single buffered']
    %7 = vsyncpa [#allocation3], 0
    %8 = vsyncpa [#allocation6], 0
    %9 = vsyncpa [#allocation4], 0
    // Predicated region
    $region2: #{tpu_custom_call.1} parent=1 // pred_check
      _
    $region3: #{tpu_custom_call.1} parent=1 // pred_check_branch
      %11 = sbr.rel (0) target = $region5
    $region4: #{tpu_custom_call.1} parent=1 // pred_region
      %s12 = sadd.s32 0, 0
      %s13 = smul.u32 2, %s12
      %s15 = ssub.s32 256, 256
      %16 = vsyncadd [#allocation3], %s15
      %s17 = smul.addr %s13, 128
      %s18 = scalar_lea.hbm %s0, %s17
      %s19 = sshll.u32 [#allocation2], 4
      %s20 = int_to_ptr.vmem [resolvable:$true] %s19
      %25 = dma.hbm_to_vmem [thread:$0]  %s18, 256, %s20, [#allocation3], 128, 128, 8
    $region5: #{tpu_custom_call.1} parent=1 // pred_fallthru
      _
    // Predicated region
    $region6: #{tpu_custom_call.1} parent=1 // pred_check
      _
    $region7: #{tpu_custom_call.1} parent=1 // pred_check_branch
      %27 = sbr.rel (0) target = $region9
    $region8: #{tpu_custom_call.1} parent=1 // pred_region
      %s28 = sadd.s32 0, 0
      %s29 = smul.u32 2, %s28
      %s31 = ssub.s32 256, 256
      %32 = vsyncadd [#allocation6], %s31
      %s33 = smul.addr %s29, 128
      %s34 = scalar_lea.hbm %s1, %s33
      %s35 = sshll.u32 [#allocation5], 4
      %s36 = int_to_ptr.vmem [resolvable:$true] %s35
      %41 = dma.hbm_to_vmem [thread:$0]  %s34, 256, %s36, [#allocation6], 128, 128, 8
    $region9: #{tpu_custom_call.1} parent=1 // pred_fallthru
      _
    // Predicated region
    $region10: #{tpu_custom_call.1} parent=1 // pred_check
      _
    $region11: #{tpu_custom_call.1} parent=1 // pred_check_branch
      %43 = sbr.rel (0) target = $region13
    $region12: #{tpu_custom_call.1} parent=1 // pred_region
      %44 = dma.done [#allocation3], 256
    $region13: #{tpu_custom_call.1} parent=1 // pred_fallthru
      _
    // Predicated region
    $region14: #{tpu_custom_call.1} parent=1 // pred_check
      _
    $region15: #{tpu_custom_call.1} parent=1 // pred_check_branch
      %46 = sbr.rel (0) target = $region17
    $region16: #{tpu_custom_call.1} parent=1 // pred_region
      %47 = dma.done [#allocation6], 256
    $region17: #{tpu_custom_call.1} parent=1 // pred_fallthru
      _
    %s48 = sadd.s32 0, 0
    %s49 = smul.u32 2, %s48
    %s50 = sadd.s32 0, 0
    %s51 = smul.u32 2, %s50
    %p52 = scmp.eq.s32.totalorder 0, 0
    // Predicated region
    $region18: #{tpu_custom_call.1} parent=1 // pred_check
      %p53 = pneg %p52
    $region19: #{tpu_custom_call.1} parent=1 // pred_check_branch
      %55 = sbr.rel (%p53) target = $region21
    $region20: #{tpu_custom_call.1} parent=1 // pred_region
      %56 = vst [vmem:[#allocation7] sm:$0xff] 0.0
    $region21: #{tpu_custom_call.1} parent=1 // pred_fallthru
      _
    %v57 = vld [vmem:[#allocation2] sm:$0xff]
    %v58 = vld [vmem:[#allocation2 + $0x8] sm:$0xff]
    %v59 = vld [vmem:[#allocation5] sm:$0xff]
    %v60 = vld [vmem:[#allocation5 + $0x8] sm:$0xff]
    %v61 = vsub.f32 %v57, %v59
    %v62 = vsub.f32 %v58, %v60
    %v63 = vand.u32 2147483647, %v61
    %v64 = vand.u32 2147483647, %v62
    %v65 = vld [vmem:[#allocation7] sm:$0xff]
    %v66 = vadd.f32 %v63, %v64
    %v67 = vadd.f32 %v65, %v66
    %68 = vst [vmem:[#allocation7] sm:$0xff] %v67
    // Predicated region
    $region22: #{tpu_custom_call.1} parent=1 // pred_check
      _
    $region23: #{tpu_custom_call.1} parent=1 // pred_check_branch
      %70 = sbr.rel (0) target = $region25
    $region24: #{tpu_custom_call.1} parent=1 // pred_region
      %s72 = ssub.s32 128, 128
      %73 = vsyncadd [#allocation4], %s72
      %s75 = sshll.u32 [#allocation7], 4
      %s76 = int_to_ptr.vmem [resolvable:$true] %s75
      %78 = dma.vmem_to_hbm [thread:$0]  %s76, 128, %s2, [#allocation4]
    $region25: #{tpu_custom_call.1} parent=1 // pred_fallthru
      _
    // Predicated region
    $region26: #{tpu_custom_call.1} parent=1 // pred_check
      _
    $region27: #{tpu_custom_call.1} parent=1 // pred_check_branch
      %80 = sbr.rel (0) target = $region29
    $region28: #{tpu_custom_call.1} parent=1 // pred_region
      %81 = dma.done [#allocation4], 128
    $region29: #{tpu_custom_call.1} parent=1 // pred_fallthru
      _
    %82 = vsyncpa [#allocation3], 1
    %83 = vsyncpa [#allocation6], 1
    %84 = vsyncpa [#allocation4], 1

</llo_original>
